<compile_context>
chip_gen: v6e
topology: v6e:2x2x1
jax: 0.10.0
libtpu: 0.0.40
codegen_flags: <defaults>
</compile_context>

<pallas_src>
import jax
import jax.numpy as jnp
from jax.experimental import pallas as pl
from jax.experimental.pallas import tpu as pltpu


def _cdiv(a, b):
    return (a + b - 1) // b


def _round_up(x, m):
    return _cdiv(x, m) * m


def _sublane(dtype):
    # Native packed sublane tile: 8 rows (4-byte), 16 (2-byte), 32 (1-byte).
    return {4: 8, 2: 16, 1: 32}.get(jnp.dtype(dtype).itemsize, 8)


# Tile caps.  At f32, worst-case double-buffered working set is
# (512*2048 + 2048*1024 + 512*1024) * 4 B * 2 ~= 28 MiB, comfortably inside the
# 48 MiB scoped-VMEM limit on v7x (64 MiB physical) and v5e/v6e (128 MiB).
_TM_CAP = 512
_TN_CAP = 1024
_TK_CAP = 2048


def _pick_tiles(m, n, k, x_dtype):
    sub = _sublane(x_dtype)
    tm = min(_TM_CAP, _round_up(m, sub))      # small-M => single M block
    tn = min(_TN_CAP, _round_up(n, 128))      # lane-aligned output dim
    if k <= _TK_CAP:
        tk = k                                # full-extent K block, no padding
    else:
        nk = _cdiv(k, _TK_CAP)                # balanced split => small K pad
        tk = _round_up(_cdiv(k, nk), 128)
    return tm, tn, tk


def _linear_kernel_f32(x_ref, w_ref, b_ref, o_ref):
    """f32-output path: accumulate directly into the resident output tile.

    x_ref: (tm, tk)  activation tile
    w_ref: (tk, tn)  weight tile, (K, N) layout
    b_ref: (1, tn)   bias tile
    o_ref: (tm, tn)  f32 output tile (resident across the K grid axis)
    """
    kk = pl.program_id(2)

    @pl.when(kk == 0)
    def _():
        # Seed the accumulator (== output tile) with the broadcast bias.
        o_ref[...] = jnp.broadcast_to(b_ref[...].astype(jnp.float32), o_ref.shape)

    o_ref[...] += jnp.dot(x_ref[...], w_ref[...], preferred_element_type=jnp.float32)


def _linear_kernel_acc(x_ref, w_ref, b_ref, o_ref, acc_ref):
    """Generic path (non-f32 output): f32 VMEM accumulator, cast at finalize."""
    kk = pl.program_id(2)

    @pl.when(kk == 0)
    def _():
        acc_ref[...] = jnp.broadcast_to(b_ref[...].astype(jnp.float32), acc_ref.shape)

    acc_ref[...] += jnp.dot(x_ref[...], w_ref[...], preferred_element_type=jnp.float32)

    @pl.when(kk == pl.num_programs(2) - 1)
    def _():
        o_ref[...] = acc_ref[...].astype(o_ref.dtype)


def linear_pallas(x, weight, bias):
    """y = x @ weight.T + bias  (F.linear semantics).

    x:      (..., in_features)
    weight: (out_features, in_features)   -- PyTorch layout
    bias:   (out_features,)
    """
    out_features, in_features = weight.shape
    lead_shape = x.shape[:-1]
    x2d = x.reshape(-1, in_features)
    m, n, k = x2d.shape[0], out_features, in_features

    out_dtype = jnp.result_type(x.dtype, weight.dtype)
    tm, tn, tk = _pick_tiles(m, n, k, x.dtype)

    # (K, N) weight layout -> plain MXU dot in the kernel (no per-step XLU
    # transpose).  Under jit with a parameter weight the transpose is hoisted.
    wt = weight.T
    b2d = bias.reshape(1, n)

    # Only the K tail must be zero-padded (garbage along K would corrupt the
    # accumulation).  Ragged M/N edges are handled by the cdiv grid: overhang
    # rows/columns are computed on undefined data but never written back.
    k_pad = _round_up(k, tk)
    if k_pad != k:
        x2d = jnp.pad(x2d, ((0, 0), (0, k_pad - k)))
        wt = jnp.pad(wt, ((0, k_pad - k), (0, 0)))

    grid = (_cdiv(m, tm), _cdiv(n, tn), k_pad // tk)

    in_specs = [
        pl.BlockSpec((tm, tk), lambda i, j, kk: (i, kk)),   # x tile
        pl.BlockSpec((tk, tn), lambda i, j, kk: (kk, j)),   # weight tile (K, N)
        pl.BlockSpec((1, tn), lambda i, j, kk: (0, j)),     # bias tile
    ]
    out_spec = pl.BlockSpec((tm, tn), lambda i, j, kk: (i, j))

    if out_dtype == jnp.float32:
        kernel = _linear_kernel_f32
        scratch = []
    else:
        kernel = _linear_kernel_acc
        scratch = [pltpu.VMEM((tm, tn), jnp.float32)]

    out = pl.pallas_call(
        kernel,
        out_shape=jax.ShapeDtypeStruct((m, n), out_dtype),
        grid_spec=pltpu.PrefetchScalarGridSpec(
            num_scalar_prefetch=0,
            grid=grid,
            in_specs=in_specs,
            out_specs=out_spec,
            scratch_shapes=scratch,
        ),
        compiler_params=pltpu.CompilerParams(
            dimension_semantics=("parallel", "parallel", "arbitrary"),
            vmem_limit_bytes=48 * 1024 * 1024,  # fits v7x's 64 MiB with reserve
        ),
    )(x2d, wt, b2d)

    return out.reshape(*lead_shape, out_features)


if __name__ == "__main__":
    key = jax.random.PRNGKey(0)
    k_x, k_w, k_b, k_x2 = jax.random.split(key, 4)

    # --- Test 1: module-faithful init (uniform weight, zero bias), 2D input ---
    in_features, out_features, batch = 32, 16, 8
    weight = jax.random.uniform(k_w, (out_features, in_features), dtype=jnp.float32)
    bias = jnp.zeros((out_features,), dtype=jnp.float32)
    x = jax.random.normal(k_x, (batch, in_features), dtype=jnp.float32)

    y = linear_pallas(x, weight, bias)
    jax.block_until_ready(y)
    y_ref = x @ weight.T + bias
    assert y.shape == (batch, out_features)
    assert jnp.allclose(y, y_ref, atol=1e-5, rtol=1e-5)

    # --- Test 2: nonzero bias + leading batch dims (exercises bias seeding,
    #             reshape handling, and ragged M/N edge blocks) ---
    bias2 = jax.random.normal(k_b, (out_features,), dtype=jnp.float32)
    x2 = jax.random.normal(k_x2, (2, 4, in_features), dtype=jnp.float32)

    y2 = linear_pallas(x2, weight, bias2)
    jax.block_until_ready(y2)
    y2_ref = x2 @ weight.T + bias2
    assert y2.shape == (2, 4, out_features)
    assert jnp.allclose(y2, y2_ref, atol=1e-5, rtol=1e-5)

    print("KERNEL_OK")
</pallas_src>

<mosaic_0001>
module attributes {stable_mosaic.version = 11 : i64} {
  func.func @_linear_kernel_f32(%arg0: i32, %arg1: i32, %arg2: i32, %arg3: memref<8x32xf32, #tpu.memory_space<vmem>>, %arg4: memref<32x128xf32, #tpu.memory_space<vmem>>, %arg5: memref<1x128xf32, #tpu.memory_space<vmem>>, %arg6: memref<8x128xf32, #tpu.memory_space<vmem>>) attributes {dimension_semantics = [#tpu.dimension_semantics<parallel>, #tpu.dimension_semantics<parallel>, #tpu.dimension_semantics<arbitrary>], iteration_bounds = array<i64: 1, 1, 1>, scalar_prefetch = 0 : i64, scratch_operands = 0 : i64, tpu.core_type = #tpu.core_type<tc>, window_params = [{transform_indices = @transform_0, window_bounds = array<i64: 8, 32>}, {transform_indices = @transform_1, window_bounds = array<i64: 32, 128>}, {transform_indices = @transform_2, window_bounds = array<i64: 1, 128>}, {transform_indices = @transform_3, window_bounds = array<i64: 8, 128>}]} {
    %c0_i32 = arith.constant 0 : i32
    %0 = arith.cmpi eq, %arg2, %c0_i32 : i32
    %1 = arith.extui %0 : i1 to i32
    %c0_i32_0 = arith.constant 0 : i32
    %2 = arith.cmpi ne, %1, %c0_i32_0 : i32
    scf.if %2 {
      %c0_8 = arith.constant 0 : index
      %c0_9 = arith.constant 0 : index
      %9 = vector.load %arg5[%c0_8, %c0_9] : memref<1x128xf32, #tpu.memory_space<vmem>>, vector<1x128xf32>
      %10 = vector.shape_cast %9 : vector<1x128xf32> to vector<1x128xf32>
      %11 = vector.broadcast %10 : vector<1x128xf32> to vector<8x128xf32>
      %c0_10 = arith.constant 0 : index
      %c0_11 = arith.constant 0 : index
      %12 = vector.load %arg6[%c0_10, %c0_11] : memref<8x128xf32, #tpu.memory_space<vmem>>, vector<8x128xf32>
      tpu.vector_store %arg6[%c0_10, %c0_11], %11 {strides = array<i32>} : memref<8x128xf32, #tpu.memory_space<vmem>>, vector<8x128xf32>,
    } else {
    }
    %c0 = arith.constant 0 : index
    %c0_1 = arith.constant 0 : index
    %3 = vector.load %arg6[%c0, %c0_1] : memref<8x128xf32, #tpu.memory_space<vmem>>, vector<8x128xf32>
    %c0_2 = arith.constant 0 : index
    %c0_3 = arith.constant 0 : index
    %4 = vector.load %arg3[%c0_2, %c0_3] : memref<8x32xf32, #tpu.memory_space<vmem>>, vector<8x32xf32>
    %c0_4 = arith.constant 0 : index
    %c0_5 = arith.constant 0 : index
    %5 = vector.load %arg4[%c0_4, %c0_5] : memref<32x128xf32, #tpu.memory_space<vmem>>, vector<32x128xf32>
    %cst = arith.constant dense<0.000000e+00> : vector<8x128xf32>
    %6 = tpu.matmul %4, %5, %cst {dimension_numbers = #tpu.dot_dimension_numbers<[1], [0], [0], [1], [0, 0, 1, 1], [], []>} : vector<8x32xf32>, vector<32x128xf32>, vector<8x128xf32> -> vector<8x128xf32>
    %7 = arith.addf %3, %6 : vector<8x128xf32>
    %c0_6 = arith.constant 0 : index
    %c0_7 = arith.constant 0 : index
    %8 = vector.load %arg6[%c0_6, %c0_7] : memref<8x128xf32, #tpu.memory_space<vmem>>, vector<8x128xf32>
    tpu.vector_store %arg6[%c0_6, %c0_7], %7 {strides = array<i32>} : memref<8x128xf32, #tpu.memory_space<vmem>>, vector<8x128xf32>,
    return
  }
  func.func @transform_0(%arg0: i32, %arg1: i32, %arg2: i32) -> (i32, i32) {
    %c0_i32 = arith.constant 0 : i32
    return %arg0, %arg2 : i32, i32
  }
  func.func @transform_1(%arg0: i32, %arg1: i32, %arg2: i32) -> (i32, i32) {
    %c0_i32 = arith.constant 0 : i32
    return %arg2, %arg1 : i32, i32
  }
  func.func @transform_2(%arg0: i32, %arg1: i32, %arg2: i32) -> (i32, i32) {
    %c0_i32 = arith.constant 0 : i32
    %c0_i32_0 = arith.constant 0 : i32
    return %c0_i32, %arg1 : i32, i32
  }
  func.func @transform_3(%arg0: i32, %arg1: i32, %arg2: i32) -> (i32, i32) {
    %c0_i32 = arith.constant 0 : i32
    return %arg0, %arg1 : i32, i32
  }
}

</mosaic_0001>

<llo_original>
// kernel: tpu_custom_call.1
$region0: #{tpu_custom_call.1}
  #allocation0 [shape = 'u32[]', space=smem, size = 0x4, offset = 0x4, fixed_abs, tag = 'smem constant byte address 0x4 - core index']
  #allocation1 [shape = 'u32[144,128]{1,0:T(1,128)}', space=vmem, size = 0x12000, scoped, tag = 'internal scratch']
  %s0 = inlined_call_operand.vmem [shape: f32[8,32], index: 0, kind: input, shape index: {}]
  %s1 = inlined_call_operand.vmem [shape: f32[32,16], index: 1, kind: input, shape index: {}]
  %s2 = inlined_call_operand.vmem [shape: f32[1,16], index: 2, kind: input, shape index: {}]
  %s3 = inlined_call_operand.hbm [shape: f32[8,16], index: 3, kind: output, shape index: {}]
  %s4 = sld [smem:[#allocation0]]
  $region26: #{tpu_custom_call.1} parent=0
    _
  %s6 = ssub.s32 1, %s4
  %s7 = scalar_select 0, %s6, %s4
  $region1: #{tpu_custom_call.1} parent=0
    #allocation2 [shape = 'u8[4096]{0}', space=vmem, size = 0x1000, scoped, tag = 'output window, operand 0, single buffered']
    #allocation3 [shape = 's32[1]{0}', space=sflag, size = 0x4, scoped, tag = 'scoped memory for tpu_custom_call.1']
    %8 = vsyncpa [#allocation3], 0
    // Predicated region
    $region2: #{tpu_custom_call.1} parent=1 // pred_check
      _
    $region3: #{tpu_custom_call.1} parent=1 // pred_check_branch
      %10 = sbr.rel (0) target = $region5
    $region4: #{tpu_custom_call.1} parent=1 // pred_region
      _
    $region5: #{tpu_custom_call.1} parent=1 // pred_fallthru
      _
    // Predicated region
    $region6: #{tpu_custom_call.1} parent=1 // pred_check
      _
    $region7: #{tpu_custom_call.1} parent=1 // pred_check_branch
      %12 = sbr.rel (0) target = $region9
    $region8: #{tpu_custom_call.1} parent=1 // pred_region
      _
    $region9: #{tpu_custom_call.1} parent=1 // pred_fallthru
      _
    // Predicated region
    $region10: #{tpu_custom_call.1} parent=1 // pred_check
      _
    $region11: #{tpu_custom_call.1} parent=1 // pred_check_branch
      %14 = sbr.rel (0) target = $region13
    $region12: #{tpu_custom_call.1} parent=1 // pred_region
      _
    $region13: #{tpu_custom_call.1} parent=1 // pred_fallthru
      _
    %p15 = scmp.eq.s32.totalorder 0, 0
    // Predicated region
    $region14: #{tpu_custom_call.1} parent=1 // pred_check
      %p16 = pneg %p15
    $region15: #{tpu_custom_call.1} parent=1 // pred_check_branch
      %18 = sbr.rel (%p16) target = $region17
    $region16: #{tpu_custom_call.1} parent=1 // pred_region
      %v19 = vld [vmem:[%s2] sm:$0x1]
      %v21 = vlaneseq
      %v22 = vshrl.u32 %v21, 7
      %v23 = vsub.s32 0, %v22
      %v24 = vrot.slane %v19, %v23
      %26 = vst [vmem:[#allocation2] sm:$0xff] %v24
    $region17: #{tpu_custom_call.1} parent=1 // pred_fallthru
      _
    %v27 = vld [vmem:[#allocation2] sm:$0xff]
    %v28 = vld [vmem:[%s0] sm:$0xff]
    %v29 = vld [vmem:[%s1] sm:$0xff]
    %v30 = vld [vmem:[%s1 + $0x8] sm:$0xff]
    %v31 = vld [vmem:[%s1 + $0x10] sm:$0xff]
    %v32 = vld [vmem:[%s1 + $0x18] sm:$0xff]
    %vm33 = vcmask 261120
    %v35 = vsel %vm33, %v28, 0
    %37 = vmatprep.subr.mxu0 0.0
    %38 = vmatpush1.msra.mxu0 0.0
    %39 = vmatprep.subr.mxu0 0.0
    %40 = vmatpush1.msra.mxu0 0.0
    %41 = vmatprep.subr.mxu0 0.0
    %42 = vmatpush1.msra.mxu0 0.0
    %43 = vmatprep.subr.mxu0 0.0
    %44 = vmatpush1.msra.mxu0 0.0
    %45 = vmatprep.subr.mxu0 0.0
    %46 = vmatpush1.msra.mxu0 0.0
    %47 = vmatprep.subr.mxu0 0.0
    %48 = vmatpush1.msra.mxu0 0.0
    %49 = vmatprep.subr.mxu0 0.0
    %50 = vmatpush1.msra.mxu0 0.0
    %51 = vmatprep.subr.mxu0 0.0
    %52 = vmatpush1.msra.mxu0 0.0
    %53 = vmatprep.subr.mxu0 0.0
    %54 = vmatpush1.msra.mxu0 0.0
    %55 = vmatprep.subr.mxu0 0.0
    %56 = vmatpush1.msra.mxu0 0.0
    %57 = vmatprep.subr.mxu0 0.0
    %58 = vmatpush1.msra.mxu0 0.0
    %59 = vmatprep.subr.mxu0 0.0
    %60 = vmatpush1.msra.mxu0 0.0
    %61 = vmatprep.subr.mxu0 0.0
    %62 = vmatpush1.msra.mxu0 %v32
    %63 = vmatprep.subr.mxu0 0.0
    %64 = vmatpush1.msra.mxu0 %v31
    %65 = vmatprep.subr.mxu0 0.0
    %66 = vmatpush1.msra.mxu0 %v30
    %67 = vmatprep.subr.mxu0 0.0
    %68 = vmatpush1.msra.mxu0 %v29
    %69 = vmatprep.subr.mxu0 0.0
    %70 = vmatpush2.msra.mxu0 0.0
    %71 = vmatprep.subr.mxu0 0.0
    %72 = vmatpush2.msra.mxu0 0.0
    %73 = vmatprep.subr.mxu0 0.0
    %74 = vmatpush2.msra.mxu0 0.0
    %75 = vmatprep.subr.mxu0 0.0
    %76 = vmatpush2.msra.mxu0 0.0
    %77 = vmatprep.subr.mxu0 0.0
    %78 = vmatpush2.msra.mxu0 0.0
    %79 = vmatprep.subr.mxu0 0.0
    %80 = vmatpush2.msra.mxu0 0.0
    %81 = vmatprep.subr.mxu0 0.0
    %82 = vmatpush2.msra.mxu0 0.0
    %83 = vmatprep.subr.mxu0 0.0
    %84 = vmatpush2.msra.mxu0 0.0
    %85 = vmatprep.subr.mxu0 0.0
    %86 = vmatpush2.msra.mxu0 0.0
    %87 = vmatprep.subr.mxu0 0.0
    %88 = vmatpush2.msra.mxu0 0.0
    %89 = vmatprep.subr.mxu0 0.0
    %90 = vmatpush2.msra.mxu0 0.0
    %91 = vmatprep.subr.mxu0 0.0
    %92 = vmatpush2.msra.mxu0 0.0
    %93 = vmatprep.subr.mxu0 0.0
    %94 = vmatpush2.msra.mxu0 0.0
    %95 = vmatprep.subr.mxu0 0.0
    %96 = vmatpush2.msra.mxu0 0.0
    %97 = vmatprep.subr.mxu0 0.0
    %98 = vmatpush2.msra.mxu0 0.0
    %99 = vmatprep.subr.mxu0 0.0
    %100 = vmatpush2.msra.mxu0 0.0
    %101 = vmatprep.mubr.f32.mxu0 0.0
    %102 = vmatmul.mubr.f32.gmra.mxu0 %v35
    %v103 = vpop.f32.mrf.mxu0
    %v104 = vadd.f32 0.0, %v103
    %v105 = vpop.f32.mrf.mxu0
    %106 = vdwg.mxu0
    %v107 = vadd.f32 %v27, %v104
    %108 = vst [vmem:[#allocation2] sm:$0xff] %v107
    // Predicated region
    $region18: #{tpu_custom_call.1} parent=1 // pred_check
      _
    $region19: #{tpu_custom_call.1} parent=1 // pred_check_branch
      %110 = sbr.rel (0) target = $region21
    $region20: #{tpu_custom_call.1} parent=1 // pred_region
      %s112 = ssub.s32 128, 128
      %113 = vsyncadd [#allocation3], %s112
      %s115 = sshll.u32 [#allocation2], 4
      %s116 = int_to_ptr.vmem [resolvable:$true] %s115
      %118 = dma.vmem_to_hbm [thread:$0]  %s116, 128, %s3, [#allocation3]
    $region21: #{tpu_custom_call.1} parent=1 // pred_fallthru
      _
    // Predicated region
    $region22: #{tpu_custom_call.1} parent=1 // pred_check
      _
    $region23: #{tpu_custom_call.1} parent=1 // pred_check_branch
      %120 = sbr.rel (0) target = $region25
    $region24: #{tpu_custom_call.1} parent=1 // pred_region
      %121 = dma.done [#allocation3], 128
    $region25: #{tpu_custom_call.1} parent=1 // pred_fallthru
      _
    %122 = vsyncpa [#allocation3], 1

</llo_original>
